<compile_context>
chip_gen: v7x
topology: tpu7x:2x2x1
jax: 0.10.0
libtpu: 0.0.40
codegen_flags: <defaults>
</compile_context>

<pallas_src>
import functools
import math

import jax
import jax.numpy as jnp
from jax import lax
from jax.experimental import pallas as pl
from jax.experimental.pallas import tpu as pltpu

_LANE = 128
_SUBLANE = 8
_LONG_SEQ_TQ = 256          # query tile for long sequences (v6e/v7x MXU M dim)
_COLLAPSE_MAX = 512         # collapse to one query tile when S_pad <= this


def _round_up(x, m):
    return (x + m - 1) // m * m


def _softmax_pv(scores, mask_ref, v, masked):
    """Masked, numerically stable softmax over keys + probs @ V."""
    if masked:
        scores = scores + mask_ref[...]                      # (1, S_pad) bias row
    m = jnp.max(scores, axis=-1, keepdims=True)
    e = jnp.exp(scores - m)
    denom = jnp.sum(e, axis=-1, keepdims=True)
    probs = e * pl.reciprocal(denom, approx=True)            # EUP slot
    out = jnp.dot(probs.astype(v.dtype), v,
                  preferred_element_type=jnp.float32)        # (TQ, Dh_pad) f32
    return probs, out


def _attn_kernel_single(x_ref, w_ref, b_ref, mask_ref, *out_refs,
                        d_pad, masked, with_probs):
    """Collapsed path: grid = (B,), one query tile per batch element."""
    if with_probs:
        out_ref, probs_ref = out_refs
    else:
        (out_ref,) = out_refs
        probs_ref = None

    x = x_ref[0]                                             # (S_pad, H) native dtype
    qkv = jnp.dot(x, w_ref[...],
                  preferred_element_type=jnp.float32)        # (S_pad, 3*Dh_pad) f32
    qkv = qkv + b_ref[...].astype(jnp.float32)
    # 128-lane-aligned static slices (scale already folded into the Q part).
    q = qkv[:, 0:d_pad].astype(x.dtype)
    k = qkv[:, d_pad:2 * d_pad].astype(x.dtype)
    v = qkv[:, 2 * d_pad:3 * d_pad].astype(x.dtype)

    scores = lax.dot_general(q, k, (((1,), (1,)), ((), ())),
                             preferred_element_type=jnp.float32)   # (S_pad, S_pad)
    probs, out = _softmax_pv(scores, mask_ref, v, masked)

    out_ref[0] = out.astype(out_ref.dtype)
    if probs_ref is not None:
        probs_ref[0] = probs.astype(probs_ref.dtype)


def _attn_kernel_tiled(x_ref, w_ref, b_ref, mask_ref, *refs,
                       d_pad, tq, masked, with_probs):
    """Long-sequence path: grid = (B, S_pad // TQ); Q/K/V cached in VMEM."""
    if with_probs:
        out_ref, probs_ref, q_scr, k_scr, v_scr = refs
    else:
        out_ref, q_scr, k_scr, v_scr = refs
        probs_ref = None

    qi = pl.program_id(1)

    @pl.when(qi == 0)
    def _project():
        x = x_ref[0]                                         # (S_pad, H)
        qkv = jnp.dot(x, w_ref[...],
                      preferred_element_type=jnp.float32)
        qkv = qkv + b_ref[...].astype(jnp.float32)
        q_scr[...] = qkv[:, 0:d_pad].astype(q_scr.dtype)
        k_scr[...] = qkv[:, d_pad:2 * d_pad].astype(k_scr.dtype)
        v_scr[...] = qkv[:, 2 * d_pad:3 * d_pad].astype(v_scr.dtype)

    q_start = pl.multiple_of(qi * tq, tq)                    # 256-aligned slice
    q = q_scr[pl.ds(q_start, tq), :]                         # (TQ, Dh_pad)
    k = k_scr[...]
    v = v_scr[...]

    scores = lax.dot_general(q, k, (((1,), (1,)), ((), ())),
                             preferred_element_type=jnp.float32)   # (TQ, S_pad)
    probs, out = _softmax_pv(scores, mask_ref, v, masked)

    out_ref[0] = out.astype(out_ref.dtype)
    if probs_ref is not None:
        probs_ref[0] = probs.astype(probs_ref.dtype)


def _vmem_limit_bytes(*, s_pad, tq, H, d_pad, itemsize, collapsed, return_probs):
    """Estimate the per-step VMEM footprint and set the limit with headroom."""
    x_blk = s_pad * H * itemsize
    w_blk = (H + 1) * 3 * d_pad * itemsize
    out_blk = tq * d_pad * itemsize
    probs_blk = tq * s_pad * itemsize if return_probs else 0
    scratch = 0 if collapsed else 3 * s_pad * d_pad * itemsize
    f32_tmp = (s_pad * 3 * d_pad + 2 * tq * s_pad + tq * d_pad) * 4
    est = 2 * (x_blk + w_blk + out_blk + probs_blk) + scratch + f32_tmp
    return int(min(60 * 1024 * 1024, max(16 * 1024 * 1024, 4 * est)))


def attention_head(x, wq, bq, wk, bk, wv, bv, *, return_probs=True):
    """Single-head attention.

    x: (B, S, H); w*: (H, Dh) (transpose of nn.Linear.weight); b*: (1, Dh).
    Returns (attention_output (B, S, Dh), attention_probs (B, S, S)) or only
    the output if return_probs=False (skips the (B, S, S) HBM writeback).
    """
    B, S, H = x.shape
    d_head = wq.shape[-1]
    dtype = x.dtype
    itemsize = jnp.dtype(dtype).itemsize

    # --- fold the 1/sqrt(Dh) scale into Q, fuse Q|K|V, pad head dim to 128 lanes.
    scale = 1.0 / math.sqrt(float(d_head))
    d_pad = _round_up(max(d_head, 1), _LANE)

    def _pad_cols(a):
        return jnp.pad(a, ((0, 0), (0, d_pad - d_head)))

    w_qkv = jnp.concatenate(
        [_pad_cols(wq * scale), _pad_cols(wk), _pad_cols(wv)], axis=-1
    ).astype(dtype)                                                 # (H, 3*Dh_pad)
    b_qkv = jnp.concatenate(
        [_pad_cols(bq * scale), _pad_cols(bk), _pad_cols(bv)], axis=-1
    ).astype(dtype)                                                 # (1, 3*Dh_pad)

    # --- sequence padding / tiling choice.
    collapsed = _round_up(S, _LANE) <= _COLLAPSE_MAX
    if collapsed:
        s_pad = _round_up(S, _LANE)
        tq = s_pad
        grid = (B,)
    else:
        tq = _LONG_SEQ_TQ
        s_pad = _round_up(S, tq)
        grid = (B, s_pad // tq)
    masked = s_pad != S
    if masked:
        x = jnp.pad(x, ((0, 0), (0, s_pad - S), (0, 0)))

    # Additive key-padding bias row, built once on the host side.
    key_idx = jnp.arange(s_pad)
    mask_bias = jnp.where(key_idx < S, 0.0, -1e30).astype(jnp.float32)[None, :]

    # --- specs.
    if collapsed:
        in_specs = [
            pl.BlockSpec((1, s_pad, H), lambda b: (b, 0, 0)),         # x (per batch)
            pl.BlockSpec((H, 3 * d_pad), lambda b: (0, 0)),           # fused W_qkv
            pl.BlockSpec((1, 3 * d_pad), lambda b: (0, 0)),           # fused b_qkv
            pl.BlockSpec((1, s_pad), lambda b: (0, 0)),               # key mask bias
        ]
        out_spec = pl.BlockSpec((1, s_pad, d_pad), lambda b: (b, 0, 0))
        probs_spec = pl.BlockSpec((1, s_pad, s_pad), lambda b: (b, 0, 0))
        scratch_shapes = []
        dim_sem = ("parallel",)
        kernel = functools.partial(_attn_kernel_single, d_pad=d_pad,
                                   masked=masked, with_probs=return_probs)
    else:
        in_specs = [
            pl.BlockSpec((1, s_pad, H), lambda b, q: (b, 0, 0)),
            pl.BlockSpec((H, 3 * d_pad), lambda b, q: (0, 0)),
            pl.BlockSpec((1, 3 * d_pad), lambda b, q: (0, 0)),
            pl.BlockSpec((1, s_pad), lambda b, q: (0, 0)),
        ]
        out_spec = pl.BlockSpec((1, tq, d_pad), lambda b, q: (b, q, 0))
        probs_spec = pl.BlockSpec((1, tq, s_pad), lambda b, q: (b, q, 0))
        scratch_shapes = [pltpu.VMEM((s_pad, d_pad), dtype)] * 3      # q, k, v cache
        dim_sem = ("parallel", "arbitrary")
        kernel = functools.partial(_attn_kernel_tiled, d_pad=d_pad, tq=tq,
                                   masked=masked, with_probs=return_probs)

    if return_probs:
        out_shape = (jax.ShapeDtypeStruct((B, s_pad, d_pad), dtype),
                     jax.ShapeDtypeStruct((B, s_pad, s_pad), dtype))
        out_specs = [out_spec, probs_spec]
    else:
        out_shape = jax.ShapeDtypeStruct((B, s_pad, d_pad), dtype)
        out_specs = out_spec

    res = pl.pallas_call(
        kernel,
        out_shape=out_shape,
        grid_spec=pltpu.PrefetchScalarGridSpec(
            num_scalar_prefetch=0,
            grid=grid,
            in_specs=in_specs,
            out_specs=out_specs,
            scratch_shapes=scratch_shapes,
        ),
        compiler_params=pltpu.CompilerParams(
            dimension_semantics=dim_sem,
            vmem_limit_bytes=_vmem_limit_bytes(
                s_pad=s_pad, tq=tq, H=H, d_pad=d_pad, itemsize=itemsize,
                collapsed=collapsed, return_probs=return_probs),
        ),
    )(x, w_qkv, b_qkv, mask_bias)

    if return_probs:
        out, probs = res
        return out[:, :S, :d_head], probs[:, :S, :S]
    return res[:, :S, :d_head]


def _reference(x, wq, bq, wk, bk, wv, bv):
    f32 = jnp.float32
    x = x.astype(f32)
    q = x @ wq.astype(f32) + bq.astype(f32)
    k = x @ wk.astype(f32) + bk.astype(f32)
    v = x @ wv.astype(f32) + bv.astype(f32)
    scores = jnp.einsum("bqd,bkd->bqk", q, k) / math.sqrt(wq.shape[-1])
    probs = jax.nn.softmax(scores, axis=-1)
    out = jnp.einsum("bqk,bkd->bqd", probs, v)
    return out, probs


def _run_case(seed_key, B, S, H, Dh, dtype=jnp.bfloat16):
    kx, kq, kbq, kk, kbk, kv_, kbv = jax.random.split(seed_key, 7)
    bound = 1.0 / math.sqrt(H)
    x = jax.random.normal(kx, (B, S, H), jnp.float32).astype(dtype)
    wq = jax.random.uniform(kq, (H, Dh), jnp.float32, -bound, bound).astype(dtype)
    bq = jax.random.uniform(kbq, (1, Dh), jnp.float32, -bound, bound).astype(dtype)
    wk = jax.random.uniform(kk, (H, Dh), jnp.float32, -bound, bound).astype(dtype)
    bk = jax.random.uniform(kbk, (1, Dh), jnp.float32, -bound, bound).astype(dtype)
    wv = jax.random.uniform(kv_, (H, Dh), jnp.float32, -bound, bound).astype(dtype)
    bv = jax.random.uniform(kbv, (1, Dh), jnp.float32, -bound, bound).astype(dtype)

    out, probs = attention_head(x, wq, bq, wk, bk, wv, bv)
    out_only = attention_head(x, wq, bq, wk, bk, wv, bv, return_probs=False)
    jax.block_until_ready((out, probs, out_only))

    ref_out, ref_probs = _reference(x, wq, bq, wk, bk, wv, bv)

    assert out.shape == (B, S, Dh) and probs.shape == (B, S, S)
    assert out_only.shape == (B, S, Dh)
    tol = dict(atol=2e-2, rtol=2e-2)
    assert jnp.allclose(out.astype(jnp.float32), ref_out, **tol)
    assert jnp.allclose(out_only.astype(jnp.float32), ref_out, **tol)
    assert jnp.allclose(probs.astype(jnp.float32), ref_probs, **tol)
    # Softmax rows must sum to 1 over the real (unpadded) keys.
    assert jnp.allclose(jnp.sum(probs.astype(jnp.float32), axis=-1), 1.0, atol=1e-2)


if __name__ == "__main__":
    key = jax.random.PRNGKey(0)
    k1, k2, k3 = jax.random.split(key, 3)
    # Small shape matching the module's forward (batch=2, seq=8, hidden=32):
    # collapsed path, grid = (B,), padded keys masked.
    _run_case(k1, B=2, S=8, H=32, Dh=16)
    # ViT-scale padded sequence (S=200 -> S_pad=256): still one query tile.
    _run_case(k2, B=2, S=200, H=32, Dh=16)
    # Long-sequence tiled path (S=600 -> S_pad=768, TQ=256, 3 query tiles).
    _run_case(k3, B=1, S=600, H=32, Dh=16)
    print("KERNEL_OK")
</pallas_src>

<mosaic_0001>
module attributes {stable_mosaic.version = 11 : i64} {
  func.func @_attn_kernel_single(%arg0: i32, %arg1: memref<1x128x32xbf16, #tpu.memory_space<vmem>>, %arg2: memref<32x384xbf16, #tpu.memory_space<vmem>>, %arg3: memref<1x384xbf16, #tpu.memory_space<vmem>>, %arg4: memref<1x128xf32, #tpu.memory_space<vmem>>, %arg5: memref<1x128x128xbf16, #tpu.memory_space<vmem>>, %arg6: memref<1x128x128xbf16, #tpu.memory_space<vmem>>) attributes {dimension_semantics = [#tpu.dimension_semantics<parallel>], iteration_bounds = array<i64: 2>, scalar_prefetch = 0 : i64, scratch_operands = 0 : i64, tpu.core_type = #tpu.core_type<tc>, window_params = [{transform_indices = @transform_0, window_bounds = array<i64: 1, 128, 32>}, {pipeline_mode = #tpu.pipeline_mode<synchronous>, transform_indices = @transform_1, window_bounds = array<i64: 32, 384>}, {pipeline_mode = #tpu.pipeline_mode<synchronous>, transform_indices = @transform_2, window_bounds = array<i64: 1, 384>}, {pipeline_mode = #tpu.pipeline_mode<synchronous>, transform_indices = @transform_3, window_bounds = array<i64: 1, 128>}, {transform_indices = @transform_4, window_bounds = array<i64: 1, 128, 128>}, {transform_indices = @transform_5, window_bounds = array<i64: 1, 128, 128>}]} {
    %c0 = arith.constant 0 : index
    %c0_0 = arith.constant 0 : index
    %c0_1 = arith.constant 0 : index
    %0 = vector.load %arg1[%c0, %c0_0, %c0_1] : memref<1x128x32xbf16, #tpu.memory_space<vmem>>, vector<1x128x32xbf16>
    %1 = vector.shape_cast %0 : vector<1x128x32xbf16> to vector<128x32xbf16>
    %c0_2 = arith.constant 0 : index
    %c0_3 = arith.constant 0 : index
    %2 = vector.load %arg2[%c0_2, %c0_3] : memref<32x384xbf16, #tpu.memory_space<vmem>>, vector<32x384xbf16>
    %cst = arith.constant dense<0.000000e+00> : vector<128x384xf32>
    %3 = tpu.matmul %1, %2, %cst {dimension_numbers = #tpu.dot_dimension_numbers<[1], [0], [0], [1], [0, 0, 1, 1], [], []>} : vector<128x32xbf16>, vector<32x384xbf16>, vector<128x384xf32> -> vector<128x384xf32>
    %c0_4 = arith.constant 0 : index
    %c0_5 = arith.constant 0 : index
    %4 = vector.load %arg3[%c0_4, %c0_5] : memref<1x384xbf16, #tpu.memory_space<vmem>>, vector<1x384xbf16>
    %5 = arith.extf %4 : vector<1x384xbf16> to vector<1x384xf32>
    %6 = vector.broadcast %5 : vector<1x384xf32> to vector<128x384xf32>
    %7 = arith.addf %3, %6 : vector<128x384xf32>
    %8 = vector.extract_strided_slice %7 {offsets = [0, 0], sizes = [128, 128], strides = [1, 1]} : vector<128x384xf32> to vector<128x128xf32>
    %9 = arith.truncf %8 : vector<128x128xf32> to vector<128x128xbf16>
    %10 = vector.extract_strided_slice %7 {offsets = [0, 128], sizes = [128, 128], strides = [1, 1]} : vector<128x384xf32> to vector<128x128xf32>
    %11 = arith.truncf %10 : vector<128x128xf32> to vector<128x128xbf16>
    %12 = vector.extract_strided_slice %7 {offsets = [0, 256], sizes = [128, 128], strides = [1, 1]} : vector<128x384xf32> to vector<128x128xf32>
    %13 = arith.truncf %12 : vector<128x128xf32> to vector<128x128xbf16>
    %cst_6 = arith.constant dense<0.000000e+00> : vector<128x128xf32>
    %14 = tpu.matmul %9, %11, %cst_6 {dimension_numbers = #tpu.dot_dimension_numbers<[1], [1], [0], [0], [0, 0, 1, 0], [], []>} : vector<128x128xbf16>, vector<128x128xbf16>, vector<128x128xf32> -> vector<128x128xf32>
    %c0_7 = arith.constant 0 : index
    %c0_8 = arith.constant 0 : index
    %15 = vector.load %arg4[%c0_7, %c0_8] : memref<1x128xf32, #tpu.memory_space<vmem>>, vector<1x128xf32>
    %16 = vector.broadcast %15 : vector<1x128xf32> to vector<128x128xf32>
    %17 = arith.addf %14, %16 : vector<128x128xf32>
    %cst_9 = arith.constant dense<0xFF800000> : vector<128xf32>
    %18 = vector.multi_reduction <maximumf>, %17, %cst_9 [1] : vector<128x128xf32> to vector<128xf32>
    %19 = vector.shape_cast %18 : vector<128xf32> to vector<128x1xf32>
    %20 = vector.broadcast %19 : vector<128x1xf32> to vector<128x128xf32>
    %21 = arith.subf %17, %20 : vector<128x128xf32>
    %22 = math.exp %21 : vector<128x128xf32>
    %cst_10 = arith.constant dense<0.000000e+00> : vector<128xf32>
    %23 = vector.multi_reduction <add>, %22, %cst_10 [1] : vector<128x128xf32> to vector<128xf32>
    %24 = vector.shape_cast %23 : vector<128xf32> to vector<128x1xf32>
    %25 = tpu.reciprocal %24 {approx = true} : vector<128x1xf32> -> vector<128x1xf32>
    %26 = vector.broadcast %25 : vector<128x1xf32> to vector<128x128xf32>
    %27 = arith.mulf %22, %26 : vector<128x128xf32>
    %28 = arith.truncf %27 : vector<128x128xf32> to vector<128x128xbf16>
    %cst_11 = arith.constant dense<0.000000e+00> : vector<128x128xf32>
    %29 = tpu.matmul %28, %13, %cst_11 {dimension_numbers = #tpu.dot_dimension_numbers<[1], [0], [0], [1], [0, 0, 1, 1], [], []>} : vector<128x128xbf16>, vector<128x128xbf16>, vector<128x128xf32> -> vector<128x128xf32>
    %30 = arith.truncf %29 : vector<128x128xf32> to vector<128x128xbf16>
    %c0_12 = arith.constant 0 : index
    %c0_13 = arith.constant 0 : index
    %c0_14 = arith.constant 0 : index
    %31 = vector.load %arg5[%c0_12, %c0_13, %c0_14] : memref<1x128x128xbf16, #tpu.memory_space<vmem>>, vector<1x128x128xbf16>
    %32 = vector.shape_cast %31 : vector<1x128x128xbf16> to vector<128x128xbf16>
    %33 = vector.shape_cast %30 : vector<128x128xbf16> to vector<1x128x128xbf16>
    tpu.vector_store %arg5[%c0_12, %c0_13, %c0_14], %33 {strides = array<i32>} : memref<1x128x128xbf16, #tpu.memory_space<vmem>>, vector<1x128x128xbf16>,
    %34 = arith.truncf %27 : vector<128x128xf32> to vector<128x128xbf16>
    %c0_15 = arith.constant 0 : index
    %c0_16 = arith.constant 0 : index
    %c0_17 = arith.constant 0 : index
    %35 = vector.load %arg6[%c0_15, %c0_16, %c0_17] : memref<1x128x128xbf16, #tpu.memory_space<vmem>>, vector<1x128x128xbf16>
    %36 = vector.shape_cast %35 : vector<1x128x128xbf16> to vector<128x128xbf16>
    %37 = vector.shape_cast %34 : vector<128x128xbf16> to vector<1x128x128xbf16>
    tpu.vector_store %arg6[%c0_15, %c0_16, %c0_17], %37 {strides = array<i32>} : memref<1x128x128xbf16, #tpu.memory_space<vmem>>, vector<1x128x128xbf16>,
    return
  }
  func.func @transform_0(%arg0: i32) -> (i32, i32, i32) {
    %c0_i32 = arith.constant 0 : i32
    %c0_i32_0 = arith.constant 0 : i32
    %c0_i32_1 = arith.constant 0 : i32
    return %arg0, %c0_i32, %c0_i32_0 : i32, i32, i32
  }
  func.func @transform_1(%arg0: i32) -> (i32, i32) {
    %c0_i32 = arith.constant 0 : i32
    %c0_i32_0 = arith.constant 0 : i32
    %c0_i32_1 = arith.constant 0 : i32
    return %c0_i32, %c0_i32_0 : i32, i32
  }
  func.func @transform_2(%arg0: i32) -> (i32, i32) {
    %c0_i32 = arith.constant 0 : i32
    %c0_i32_0 = arith.constant 0 : i32
    %c0_i32_1 = arith.constant 0 : i32
    return %c0_i32, %c0_i32_0 : i32, i32
  }
  func.func @transform_3(%arg0: i32) -> (i32, i32) {
    %c0_i32 = arith.constant 0 : i32
    %c0_i32_0 = arith.constant 0 : i32
    %c0_i32_1 = arith.constant 0 : i32
    return %c0_i32, %c0_i32_0 : i32, i32
  }
  func.func @transform_4(%arg0: i32) -> (i32, i32, i32) {
    %c0_i32 = arith.constant 0 : i32
    %c0_i32_0 = arith.constant 0 : i32
    %c0_i32_1 = arith.constant 0 : i32
    return %arg0, %c0_i32, %c0_i32_0 : i32, i32, i32
  }
  func.func @transform_5(%arg0: i32) -> (i32, i32, i32) {
    %c0_i32 = arith.constant 0 : i32
    %c0_i32_0 = arith.constant 0 : i32
    %c0_i32_1 = arith.constant 0 : i32
    return %arg0, %c0_i32, %c0_i32_0 : i32, i32, i32
  }
}

</mosaic_0001>

<llo_original>
// kernel: tpu_custom_call.1
$region0: #{tpu_custom_call.1}
  #allocation0 [shape = 'u32[]', space=smem, size = 0x4, offset = 0x4, fixed_abs, tag = 'smem constant byte address 0x4 - core index']
  #allocation1 [shape = 'u32[144,128]{1,0:T(1,128)}', space=vmem, size = 0x12000, scoped, tag = 'internal scratch']
  %s0 = inlined_call_operand.vmem [shape: bf16[2,128,32], index: 0, kind: input, shape index: {}]
  %s1 = inlined_call_operand.vmem [shape: bf16[32,384], index: 1, kind: input, shape index: {}]
  %s2 = inlined_call_operand.vmem [shape: bf16[1,384], index: 2, kind: input, shape index: {}]
  %s3 = inlined_call_operand.vmem [shape: f32[1,128], index: 3, kind: input, shape index: {}]
  %s4 = inlined_call_operand.hbm [shape: bf16[2,128,128], index: 4, kind: output, shape index: {0}]
  %s5 = inlined_call_operand.hbm [shape: bf16[2,128,128], index: 5, kind: output, shape index: {1}]
  %6 = xla_tuple %s4, %s5
  %s7 = sld [smem:[#allocation0]]
  $region57: #{tpu_custom_call.1} parent=0
    _
  %s9 = ssub.s32 1, %s7
  %s10 = scalar_select 0, %s9, %s7
  $region1: #{tpu_custom_call.1} parent=0
    #allocation2 [shape = 'u8[65536]{0}', space=vmem, size = 0x10000, scoped, tag = 'output window, operand 0']
    #allocation3 [shape = 's32[2]{0}', space=sflag, size = 0x8, scoped, tag = 'scoped memory for tpu_custom_call.1']
    #allocation4 [shape = 'u8[65536]{0}', space=vmem, size = 0x10000, scoped, tag = 'output window, operand 1']
    #allocation5 [shape = 's32[2]{0}', space=sflag, size = 0x8, scoped, tag = 'scoped memory for tpu_custom_call.1']
    %11 = vsyncpa [#allocation3], 0
    %s12 = scalar_lea.sflag [#allocation3], 1
    %13 = vsyncpa %s12, 0
    %14 = vsyncpa [#allocation5], 0
    %s15 = scalar_lea.sflag [#allocation5], 1
    %16 = vsyncpa %s15, 0
    loop: start=0, step=1, limit=4
    $region2: #{tpu_custom_call.1} parent=1 // loop_pre_header
      _
    $region3: #{tpu_custom_call.1} parent=1 // loop_header
      %s18 = sphi 0, %s22
      %p19 = scmp.ge.s32.totalorder %s18, 4
      %s28 = sphi 0, %s30
      %s31 = sphi 0, %s28
      %s32 = sphi 0, %s31
      %s48 = sphi 0, %s32
      %s52 = sphi 0, %s52
      %s54 = sphi 0, %s52
      %s55 = sphi 0, %s54
      %s69 = sphi 0, %s55
      %s73 = sphi 0, %s73
      %s75 = sphi 0, %s73
      %s76 = sphi 0, %s75
      %s90 = sphi 0, %s76
      %s94 = sphi 0, %s94
      %s96 = sphi 0, %s94
      %s97 = sphi 0, %s96
      %s111 = sphi 0, %s97
      %s117 = sphi 0, %s119
      %s120 = sphi 0, %s117
      %s121 = sphi 0, %s120
      %s137 = sphi 0, %s121
      %s143 = sphi 0, %s145
      %s146 = sphi 0, %s143
      %s147 = sphi 0, %s146
      %s163 = sphi 0, %s147
    $region4: #{tpu_custom_call.1} parent=1 // loop_header_branch
      %21 = sbr.rel (%p19) target = $region8
    $region5: #{tpu_custom_call.1} parent=1 // loop_body
      %s23 = ssub.s32 %s18, 1
      %s24 = ssub.s32 %s18, 2
      %s25 = sadd.s32 %s18, 1
      %s26 = ssub.s32 %s18, %s25
      %p27 = scmp.eq.s32.totalorder %s26, 0
      %s29 = sadd.s32 %s28, 1
      %s30 = scalar_select %p27, %s28, %s29
      %p33 = pneg %p27
      %p34 = scmp.eq.s32.totalorder %s18, 1
      %p35 = por %p33, %p34
      %p36 = scmp.ne.s32.totalorder %s28, %s31
      %p37 = scmp.eq.s32.totalorder %s18, 0
      %p38 = por %p36, %p37
      %p39 = scmp.ne.s32.totalorder %s28, %s31
      %p40 = scmp.eq.s32.totalorder %s23, 1
      %p41 = por %p39, %p40
      %p42 = scmp.ne.s32.totalorder %s31, %s32
      %p43 = scmp.eq.s32.totalorder %s23, 0
      %p44 = por %p42, %p43
      %p45 = scmp.ne.s32.totalorder %s31, %s32
      %p46 = scmp.eq.s32.totalorder %s24, 1
      %p47 = por %p45, %p46
      %p49 = scmp.ne.s32.totalorder %s32, %s48
      %p50 = scmp.eq.s32.totalorder %s24, 0
      %p51 = por %p49, %p50
      %s53 = sadd.s32 %s52, 1
      %p56 = scmp.eq.s32.totalorder %s18, 1
      %p57 = scmp.ne.s32.totalorder %s52, %s54
      %p58 = scmp.eq.s32.totalorder %s18, 0
      %p59 = por %p57, %p58
      %p60 = scmp.ne.s32.totalorder %s52, %s54
      %p61 = scmp.eq.s32.totalorder %s23, 1
      %p62 = por %p60, %p61
      %p63 = scmp.ne.s32.totalorder %s54, %s55
      %p64 = scmp.eq.s32.totalorder %s23, 0
      %p65 = por %p63, %p64
      %p66 = scmp.ne.s32.totalorder %s54, %s55
      %p67 = scmp.eq.s32.totalorder %s24, 1
      %p68 = por %p66, %p67
      %p70 = scmp.ne.s32.totalorder %s55, %s69
      %p71 = scmp.eq.s32.totalorder %s24, 0
      %p72 = por %p70, %p71
      %s74 = sadd.s32 %s73, 1
      %p77 = scmp.eq.s32.totalorder %s18, 1
      %p78 = scmp.ne.s32.totalorder %s73, %s75
      %p79 = scmp.eq.s32.totalorder %s18, 0
      %p80 = por %p78, %p79
      %p81 = scmp.ne.s32.totalorder %s73, %s75
      %p82 = scmp.eq.s32.totalorder %s23, 1
      %p83 = por %p81, %p82
      %p84 = scmp.ne.s32.totalorder %s75, %s76
      %p85 = scmp.eq.s32.totalorder %s23, 0
      %p86 = por %p84, %p85
      %p87 = scmp.ne.s32.totalorder %s75, %s76
      %p88 = scmp.eq.s32.totalorder %s24, 1
      %p89 = por %p87, %p88
      %p91 = scmp.ne.s32.totalorder %s76, %s90
      %p92 = scmp.eq.s32.totalorder %s24, 0
      %p93 = por %p91, %p92
      %s95 = sadd.s32 %s94, 1
      %p98 = scmp.eq.s32.totalorder %s18, 1
      %p99 = scmp.ne.s32.totalorder %s94, %s96
      %p100 = scmp.eq.s32.totalorder %s18, 0
      %p101 = por %p99, %p100
      %p102 = scmp.ne.s32.totalorder %s94, %s96
      %p103 = scmp.eq.s32.totalorder %s23, 1
      %p104 = por %p102, %p103
      %p105 = scmp.ne.s32.totalorder %s96, %s97
      %p106 = scmp.eq.s32.totalorder %s23, 0
      %p107 = por %p105, %p106
      %p108 = scmp.ne.s32.totalorder %s96, %s97
      %p109 = scmp.eq.s32.totalorder %s24, 1
      %p110 = por %p108, %p109
      %p112 = scmp.ne.s32.totalorder %s97, %s111
      %p113 = scmp.eq.s32.totalorder %s24, 0
      %p114 = por %p112, %p113
      %s115 = ssub.s32 %s18, %s25
      %p116 = scmp.eq.s32.totalorder %s115, 0
      %s118 = sadd.s32 %s117, 1
      %s119 = scalar_select %p116, %s117, %s118
      %p122 = pneg %p116
      %p123 = scmp.eq.s32.totalorder %s18, 1
      %p124 = por %p122, %p123
      %p125 = scmp.ne.s32.totalorder %s117, %s120
      %p126 = scmp.eq.s32.totalorder %s18, 0
      %p127 = por %p125, %p126
      %p128 = scmp.ne.s32.totalorder %s117, %s120
      %p129 = scmp.eq.s32.totalorder %s23, 1
      %p130 = por %p128, %p129
      %p131 = scmp.ne.s32.totalorder %s120, %s121
      %p132 = scmp.eq.s32.totalorder %s23, 0
      %p133 = por %p131, %p132
      %p134 = scmp.ne.s32.totalorder %s120, %s121
      %p135 = scmp.eq.s32.totalorder %s24, 1
      %p136 = por %p134, %p135
      %p138 = scmp.ne.s32.totalorder %s121, %s137
      %p139 = scmp.eq.s32.totalorder %s24, 0
      %p140 = por %p138, %p139
      %s141 = ssub.s32 %s18, %s25
      %p142 = scmp.eq.s32.totalorder %s141, 0
      %s144 = sadd.s32 %s143, 1
      %s145 = scalar_select %p142, %s143, %s144
      %p148 = pneg %p142
      %p149 = scmp.eq.s32.totalorder %s18, 1
      %p150 = por %p148, %p149
      %p151 = scmp.ne.s32.totalorder %s143, %s146
      %p152 = scmp.eq.s32.totalorder %s18, 0
      %p153 = por %p151, %p152
      %p154 = scmp.ne.s32.totalorder %s143, %s146
      %p155 = scmp.eq.s32.totalorder %s23, 1
      %p156 = por %p154, %p155
      %p157 = scmp.ne.s32.totalorder %s146, %s147
      %p158 = scmp.eq.s32.totalorder %s23, 0
      %p159 = por %p157, %p158
      %p160 = scmp.ne.s32.totalorder %s146, %s147
      %p161 = scmp.eq.s32.totalorder %s24, 1
      %p162 = por %p160, %p161
      %p164 = scmp.ne.s32.totalorder %s147, %s163
      %p165 = scmp.eq.s32.totalorder %s24, 0
      %p166 = por %p164, %p165
      %p167 = scmp.le.s32.totalorder 1, %s18
      %p168 = scmp.lt.s32.totalorder %s18, 3
      %p169 = pnand %p167, %p168
      %p170 = pneg %p169
      // Predicated region
      $region9: #{tpu_custom_call.1} parent=5 // pred_check
        _
      $region10: #{tpu_custom_call.1} parent=5 // pred_check_branch
        %172 = sbr.rel (%p169) target = $region12
      $region11: #{tpu_custom_call.1} parent=5 // pred_region
        %s173 = ssub.s32 %s18, 1
        // Predicated region
        $region13: #{tpu_custom_call.1} parent=11 // pred_check
          %p174 = pneg %p65
        $region14: #{tpu_custom_call.1} parent=11 // pred_check_branch
          %176 = sbr.rel (%p174) target = $region16
        $region15: #{tpu_custom_call.1} parent=11 // pred_region
          _
        $region16: #{tpu_custom_call.1} parent=11 // pred_fallthru
          _
        // Predicated region
        $region17: #{tpu_custom_call.1} parent=11 // pred_check
          %p177 = pneg %p86
        $region18: #{tpu_custom_call.1} parent=11 // pred_check_branch
          %179 = sbr.rel (%p177) target = $region20
        $region19: #{tpu_custom_call.1} parent=11 // pred_region
          _
        $region20: #{tpu_custom_call.1} parent=11 // pred_fallthru
          _
        // Predicated region
        $region21: #{tpu_custom_call.1} parent=11 // pred_check
          %p180 = pneg %p107
        $region22: #{tpu_custom_call.1} parent=11 // pred_check_branch
          %182 = sbr.rel (%p180) target = $region24
        $region23: #{tpu_custom_call.1} parent=11 // pred_region
          _
        $region24: #{tpu_custom_call.1} parent=11 // pred_fallthru
          _
      $region12: #{tpu_custom_call.1} parent=5 // pred_fallthru
        _
      %p183 = scmp.lt.s32.totalorder %s18, 2
      // Predicated region
      $region25: #{tpu_custom_call.1} parent=5 // pred_check
        %p184 = pneg %p183
      $region26: #{tpu_custom_call.1} parent=5 // pred_check_branch
        %186 = sbr.rel (%p184) target = $region28
      $region27: #{tpu_custom_call.1} parent=5 // pred_region
        // Predicated region
        $region29: #{tpu_custom_call.1} parent=27 // pred_check
          %p187 = pneg %p38
        $region30: #{tpu_custom_call.1} parent=27 // pred_check_branch
          %189 = sbr.rel (%p187) target = $region32
        $region31: #{tpu_custom_call.1} parent=27 // pred_region
          %p190 = scmp.lt.s32.totalorder %s18, 1
          %s191 = scalar_select %p190, %s18, 1
          %s192 = smul.addr %s191, 16
          %s193 = smul.addr %s192, 4
          %s194 = scalar_lea.vmem %s0, %s193
        $region32: #{tpu_custom_call.1} parent=27 // pred_fallthru
          _
      $region28: #{tpu_custom_call.1} parent=5 // pred_fallthru
        _
      %p195 = scmp.le.s32.totalorder 1, %s18
      %p196 = scmp.lt.s32.totalorder %s18, 3
      %p197 = pnand %p195, %p196
      %p198 = pneg %p197
      // Predicated region
      $region33: #{tpu_custom_call.1} parent=5 // pred_check
        _
      $region34: #{tpu_custom_call.1} parent=5 // pred_check_branch
        %200 = sbr.rel (%p197) target = $region36
      $region35: #{tpu_custom_call.1} parent=5 // pred_region
        %s201 = ssub.s32 %s18, 1
        %p202 = scmp.lt.s32.totalorder %s23, 1
        %s203 = scalar_select %p202, %s23, 1
        %s204 = smul.addr %s203, 16
        %s205 = smul.addr %s204, 4
        %s206 = scalar_lea.vmem %s0, %s205
        %p207 = pneg %p44
        %p208 = pneg %p41
        %p209 = pneg %p65
        %p210 = pneg %p62
        %p211 = pneg %p86
        %p212 = pneg %p83
        %p213 = pneg %p107
        %p214 = pneg %p104
        %p215 = pneg %p133
        %p216 = pneg %p130
        %s217 = sand.u32 %s120, 1
        %s218 = scalar_lea.sflag [#allocation3], %s217
        %s219 = sand.u32 %s120, 1
        %s220 = smul.addr %s219, 64
        %s221 = scalar_lea.vmem [#allocation2], %s220
        %p222 = pneg %p159
        %p223 = pneg %p156
        %s224 = sand.u32 %s146, 1
        %s225 = scalar_lea.sflag [#allocation5], %s224
        %s226 = sand.u32 %s146, 1
        %s227 = smul.addr %s226, 64
        %s228 = scalar_lea.vmem [#allocation4], %s227
        %p229 = scmp.lt.s32.totalorder %s23, 1
        %s230 = scalar_select %p229, %s23, 1
        %s231 = smul.addr %s230, 16
        %s232 = smul.addr %s231, 4
        %s233 = scalar_lea.vmem %s0, %s232
        %v235 = vld [vmem:[%s233] sm:$0xf]
        %v236 = vld [vmem:[%s233 + $0x4] sm:$0xf]
        %v237 = vld [vmem:[%s233 + $0x8] sm:$0xf]
        %v238 = vld [vmem:[%s233 + $0xc] sm:$0xf]
        %v239 = vld [vmem:[%s233 + $0x10] sm:$0xf]
        %v240 = vld [vmem:[%s233 + $0x14] sm:$0xf]
        %v241 = vld [vmem:[%s233 + $0x18] sm:$0xf]
        %v242 = vld [vmem:[%s233 + $0x1c] sm:$0xf]
        %v243 = vld [vmem:[%s233 + $0x20] sm:$0xf]
        %v244 = vld [vmem:[%s233 + $0x24] sm:$0xf]
        %v245 = vld [vmem:[%s233 + $0x28] sm:$0xf]
        %v246 = vld [vmem:[%s233 + $0x2c] sm:$0xf]
        %v247 = vld [vmem:[%s233 + $0x30] sm:$0xf]
        %v248 = vld [vmem:[%s233 + $0x34] sm:$0xf]
        %v249 = vld [vmem:[%s233 + $0x38] sm:$0xf]
        %v250 = vld [vmem:[%s233 + $0x3c] sm:$0xf]
        %v251 = vld [vmem:[%s1] sm:$0xff]
        %v252 = vld [vmem:[%s1 + $0x8] sm:$0xf]
        %v253 = vld [vmem:[%s1 + $0xc] sm:$0xff]
        %v254 = vld [vmem:[%s1 + $0x14] sm:$0xf]
        %v255 = vld [vmem:[%s1 + $0x18] sm:$0xff]
        %v256 = vld [vmem:[%s1 + $0x20] sm:$0xf]
        %v257 = vld [vmem:[%s1 + $0x24] sm:$0xff]
        %v258 = vld [vmem:[%s1 + $0x2c] sm:$0xf]
        %v259 = vld [vmem:[%s2] sm:$0x7]
        %v260 = vunpack.c.l.bf16 %v259
        %v262 = vlaneseq
        %v263 = vshrl.u32 %v262, 7
        %v264 = vsub.s32 0, %v263
        %v265 = vrot.slane %v260, %v264
        %v266 = vlaneseq
        %v267 = vshrl.u32 %v266, 7
        %v268 = vsub.s32 2, %v267
        %v269 = vrot.slane %v260, %v268
        %v270 = vlaneseq
        %v271 = vshrl.u32 %v270, 7
        %v272 = vsub.s32 4, %v271
        %v273 = vrot.slane %v260, %v272
        %v277 = vlaneseq
        %v278 = vshrl.u32 %v277, 7
        %v279 = vsub.s32 0, %v278
        %v280 = vrot.slane %v265, %v279
        %v281 = vlaneseq
        %v282 = vshrl.u32 %v281, 7
        %v283 = vsub.s32 0, %v282
        %v284 = vrot.slane %v269, %v283
        %v285 = vlaneseq
        %v286 = vshrl.u32 %v285, 7
        %v287 = vsub.s32 0, %v286
        %v288 = vrot.slane %v273, %v287
        %v305 = vunpack.c.l.b16 %v235
        %v306 = vunpack.c.l.b16 %v236
        %v307 = vunpack.c.l.b16 %v237
        %v308 = vunpack.c.l.b16 %v238
        %v309 = vunpack.c.l.b16 %v239
        %v310 = vunpack.c.l.b16 %v240
        %v311 = vunpack.c.l.b16 %v241
        %v312 = vunpack.c.l.b16 %v242
        %v313 = vunpack.c.l.b16 %v243
        %v314 = vunpack.c.l.b16 %v244
        %v315 = vunpack.c.l.b16 %v245
        %v316 = vunpack.c.l.b16 %v246
        %v317 = vunpack.c.l.b16 %v247
        %v318 = vunpack.c.l.b16 %v248
        %v319 = vunpack.c.l.b16 %v249
        %v320 = vunpack.c.l.b16 %v250
        %v321 = vpack.c.b16 %v306, %v305
        %v322 = vpack.c.b16 %v308, %v307
        %v323 = vpack.c.b16 %v310, %v309
        %v324 = vpack.c.b16 %v312, %v311
        %v325 = vpack.c.b16 %v314, %v313
        %v326 = vpack.c.b16 %v316, %v315
        %v327 = vpack.c.b16 %v318, %v317
        %v328 = vpack.c.b16 %v320, %v319
        %v337 = vunpack.c.l.b16 %v251
        %v338 = vunpack.c.h.b16 %v251
        %v339 = vunpack.c.l.b16 %v252
        %v340 = vunpack.c.l.b16 %v253
        %v341 = vunpack.c.h.b16 %v253
        %v342 = vunpack.c.l.b16 %v254
        %v343 = vunpack.c.l.b16 %v255
        %v344 = vunpack.c.h.b16 %v255
        %v345 = vunpack.c.l.b16 %v256
        %v346 = vunpack.c.l.b16 %v257
        %v347 = vunpack.c.h.b16 %v257
        %v348 = vunpack.c.l.b16 %v258
        %v349 = vpack.c.b16 %v340, %v337
        %v350 = vpack.c.b16 %v341, %v338
        %v351 = vpack.c.b16 %v342, %v339
        %v352 = vpack.c.b16 %v346, %v343
        %v353 = vpack.c.b16 %v347, %v344
        %v354 = vpack.c.b16 %v348, %v345
        %vm361 = vcmask 261120
        %v363 = vsel %vm361, %v321, 0
        %v366 = vsel %vm361, %v322, 0
        %v369 = vsel %vm361, %v323, 0
        %v372 = vsel %vm361, %v324, 0
        %v375 = vsel %vm361, %v325, 0
        %v378 = vsel %vm361, %v326, 0
        %v381 = vsel %vm361, %v327, 0
        %v384 = vsel %vm361, %v328, 0
        %386 = vmatprep.subr.bf16.mxu0 %v350
        %387 = vmatpush1.bf16.msra.mxu0 %v349
        %388 = vmatprep.subr.bf16.mxu0 %v353
        %389 = vmatpush1.bf16.msra.mxu0 %v352
        %390 = vmatprep.subr.bf16.mxu0 0
        %391 = vmatpush1.bf16.msra.mxu0 0
        %392 = vmatprep.subr.bf16.mxu0 0
        %393 = vmatpush1.bf16.msra.mxu0 0
        %394 = vmatprep.subr.bf16.mxu0 0
        %395 = vmatpush1.bf16.msra.mxu0 0
        %396 = vmatprep.subr.bf16.mxu0 0
        %397 = vmatpush1.bf16.msra.mxu0 0
        %398 = vmatprep.subr.bf16.mxu0 0
        %399 = vmatpush1.bf16.msra.mxu0 0
        %400 = vmatprep.subr.bf16.mxu0 0
        %401 = vmatpush1.bf16.msra.mxu0 0
        %402 = vmatprep.subr.bf16.mxu0 0
        %403 = vmatpush1.bf16.msra.mxu0 0
        %404 = vmatprep.subr.bf16.mxu0 0
        %405 = vmatpush1.bf16.msra.mxu0 0
        %406 = vmatprep.subr.bf16.mxu0 0
        %407 = vmatpush1.bf16.msra.mxu0 0
        %408 = vmatprep.subr.bf16.mxu0 0
        %409 = vmatpush1.bf16.msra.mxu0 0
        %410 = vmatprep.subr.bf16.mxu0 0
        %411 = vmatpush1.bf16.msra.mxu0 0
        %412 = vmatprep.subr.bf16.mxu0 0
        %413 = vmatpush1.bf16.msra.mxu0 0
        %414 = vmatprep.subr.bf16.mxu0 0
        %415 = vmatpush1.bf16.msra.mxu0 0
        %416 = vmatprep.subr.bf16.mxu0 0
        %417 = vmatpush1.bf16.msra.mxu0 0
        %418 = vmatprep.mubr.bf16.mxu0 0
        %419 = vmatmul.mubr.bf16.gmra.mrb[0].mxu0 %v363
        %v420 = vpop.f32.mrb[0].mxu0
        %v421 = vadd.f32 %v280, %v420
        %v422 = vpop.f32.mrb[0].mxu0
        %v423 = vadd.f32 %v284, %v422
        %v424 = vpop.f32.mrb[0].mxu0
        %v425 = vadd.f32 %v280, %v424
        %v426 = vpop.f32.mrb[0].mxu0
        %v427 = vadd.f32 %v284, %v426
        %428 = vmatprep.mubr.bf16.mxu0 0
        %429 = vmatmul.mubr.bf16.gmra.mrb[0].mxu0 %v366
        %v430 = vpop.f32.mrb[0].mxu0
        %v431 = vadd.f32 %v280, %v430
        %v432 = vpop.f32.mrb[0].mxu0
        %v433 = vadd.f32 %v284, %v432
        %v434 = vpop.f32.mrb[0].mxu0
        %v435 = vadd.f32 %v280, %v434
        %v436 = vpop.f32.mrb[0].mxu0
        %v437 = vadd.f32 %v284, %v436
        %438 = vmatprep.mubr.bf16.mxu0 0
        %439 = vmatmul.mubr.bf16.gmra.mrb[0].mxu0 %v369
        %v440 = vpop.f32.mrb[0].mxu0
        %v441 = vadd.f32 %v280, %v440
        %v442 = vpop.f32.mrb[0].mxu0
        %v443 = vadd.f32 %v284, %v442
        %v444 = vpop.f32.mrb[0].mxu0
        %v445 = vadd.f32 %v280, %v444
        %v446 = vpop.f32.mrb[0].mxu0
        %v447 = vadd.f32 %v284, %v446
        %448 = vmatprep.mubr.bf16.mxu0 0
        %449 = vmatmul.mubr.bf16.gmra.mrb[0].mxu0 %v372
        %v450 = vpop.f32.mrb[0].mxu0
        %v451 = vadd.f32 %v280, %v450
        %v452 = vpop.f32.mrb[0].mxu0
        %v453 = vadd.f32 %v284, %v452
        %v454 = vpop.f32.mrb[0].mxu0
        %v455 = vadd.f32 %v280, %v454
        %v456 = vpop.f32.mrb[0].mxu0
        %v457 = vadd.f32 %v284, %v456
        %458 = vmatprep.mubr.bf16.mxu0 0
        %459 = vmatmul.mubr.bf16.gmra.mrb[0].mxu0 %v375
        %v460 = vpop.f32.mrb[0].mxu0
        %v461 = vadd.f32 %v280, %v460
        %v462 = vpop.f32.mrb[0].mxu0
        %v463 = vadd.f32 %v284, %v462
        %v464 = vpop.f32.mrb[0].mxu0
        %v465 = vadd.f32 %v280, %v464
        %v466 = vpop.f32.mrb[0].mxu0
        %v467 = vadd.f32 %v284, %v466
        %468 = vmatprep.mubr.bf16.mxu0 0
        %469 = vmatmul.mubr.bf16.gmra.mrb[0].mxu0 %v378
        %v470 = vpop.f32.mrb[0].mxu0
        %v471 = vadd.f32 %v280, %v470
        %v472 = vpop.f32.mrb[0].mxu0
        %v473 = vadd.f32 %v284, %v472
        %v474 = vpop.f32.mrb[0].mxu0
        %v475 = vadd.f32 %v280, %v474
        %v476 = vpop.f32.mrb[0].mxu0
        %v477 = vadd.f32 %v284, %v476
        %478 = vmatprep.mubr.bf16.mxu0 0
        %479 = vmatmul.mubr.bf16.gmra.mrb[0].mxu0 %v381
        %v480 = vpop.f32.mrb[0].mxu0
        %v481 = vadd.f32 %v280, %v480
        %v482 = vpop.f32.mrb[0].mxu0
        %v483 = vadd.f32 %v284, %v482
        %v484 = vpop.f32.mrb[0].mxu0
        %v485 = vadd.f32 %v280, %v484
        %v486 = vpop.f32.mrb[0].mxu0
        %v487 = vadd.f32 %v284, %v486
        %488 = vmatprep.mubr.bf16.mxu0 0
        %489 = vmatmul.mubr.bf16.gmra.mrb[0].mxu0 %v384
        %v490 = vpop.f32.mrb[0].mxu0
        %v491 = vadd.f32 %v280, %v490
        %v492 = vpop.f32.mrb[0].mxu0
        %v493 = vadd.f32 %v284, %v492
        %v494 = vpop.f32.mrb[0].mxu0
        %v495 = vadd.f32 %v280, %v494
        %v496 = vpop.f32.mrb[0].mxu0
        %v497 = vadd.f32 %v284, %v496
        %498 = vdwg.mxu0
        %499 = vmatprep.subr.bf16.mxu0 0
        %500 = vmatpush1.bf16.msra.mxu0 %v351
        %501 = vmatprep.subr.bf16.mxu0 0
        %502 = vmatpush1.bf16.msra.mxu0 %v354
        %503 = vmatprep.subr.bf16.mxu0 0
        %504 = vmatpush1.bf16.msra.mxu0 0
        %505 = vmatprep.subr.bf16.mxu0 0
        %506 = vmatpush1.bf16.msra.mxu0 0
        %507 = vmatprep.subr.bf16.mxu0 0
        %508 = vmatpush1.bf16.msra.mxu0 0
        %509 = vmatprep.subr.bf16.mxu0 0
        %510 = vmatpush1.bf16.msra.mxu0 0
        %511 = vmatprep.subr.bf16.mxu0 0
        %512 = vmatpush1.bf16.msra.mxu0 0
        %513 = vmatprep.subr.bf16.mxu0 0
        %514 = vmatpush1.bf16.msra.mxu0 0
        %515 = vmatprep.subr.bf16.mxu0 0
        %516 = vmatpush1.bf16.msra.mxu0 0
        %517 = vmatprep.subr.bf16.mxu0 0
        %518 = vmatpush1.bf16.msra.mxu0 0
        %519 = vmatprep.subr.bf16.mxu0 0
        %520 = vmatpush1.bf16.msra.mxu0 0
        %521 = vmatprep.subr.bf16.mxu0 0
        %522 = vmatpush1.bf16.msra.mxu0 0
        %523 = vmatprep.subr.bf16.mxu0 0
        %524 = vmatpush1.bf16.msra.mxu0 0
        %525 = vmatprep.subr.bf16.mxu0 0
        %526 = vmatpush1.bf16.msra.mxu0 0
        %527 = vmatprep.subr.bf16.mxu0 0
        %528 = vmatpush1.bf16.msra.mxu0 0
        %529 = vmatprep.subr.bf16.mxu0 0
        %530 = vmatpush1.bf16.msra.mxu0 0
        %531 = vmatprep.mubr.bf16.mxu0 0
        %532 = vmatmul.mubr.bf16.gmra.mrb[0].mxu0 %v363
        %v533 = vpop.f32.mrb[0].mxu0
        %v534 = vadd.f32 %v288, %v533
        %v535 = vpop.f32.mrb[0].mxu0
        %v536 = vpop.f32.mrb[0].mxu0
        %v537 = vadd.f32 %v288, %v536
        %v538 = vpop.f32.mrb[0].mxu0
        %539 = vmatprep.mubr.bf16.mxu0 0
        %540 = vmatmul.mubr.bf16.gmra.mrb[0].mxu0 %v366
        %v541 = vpop.f32.mrb[0].mxu0
        %v542 = vadd.f32 %v288, %v541
        %v543 = vpop.f32.mrb[0].mxu0
        %v544 = vpop.f32.mrb[0].mxu0
        %v545 = vadd.f32 %v288, %v544
        %v546 = vpop.f32.mrb[0].mxu0
        %547 = vmatprep.mubr.bf16.mxu0 0
        %548 = vmatmul.mubr.bf16.gmra.mrb[0].mxu0 %v369
        %v549 = vpop.f32.mrb[0].mxu0
        %v550 = vadd.f32 %v288, %v549
        %v551 = vpop.f32.mrb[0].mxu0
        %v552 = vpop.f32.mrb[0].mxu0
        %v553 = vadd.f32 %v288, %v552
        %v554 = vpop.f32.mrb[0].mxu0
        %555 = vmatprep.mubr.bf16.mxu0 0
        %556 = vmatmul.mubr.bf16.gmra.mrb[0].mxu0 %v372
        %v557 = vpop.f32.mrb[0].mxu0
        %v558 = vadd.f32 %v288, %v557
        %v559 = vpop.f32.mrb[0].mxu0
        %v560 = vpop.f32.mrb[0].mxu0
        %v561 = vadd.f32 %v288, %v560
        %v562 = vpop.f32.mrb[0].mxu0
        %563 = vmatprep.mubr.bf16.mxu0 0
        %564 = vmatmul.mubr.bf16.gmra.mrb[0].mxu0 %v375
        %v565 = vpop.f32.mrb[0].mxu0
        %v566 = vadd.f32 %v288, %v565
        %v567 = vpop.f32.mrb[0].mxu0
        %v568 = vpop.f32.mrb[0].mxu0
        %v569 = vadd.f32 %v288, %v568
        %v570 = vpop.f32.mrb[0].mxu0
        %571 = vmatprep.mubr.bf16.mxu0 0
        %572 = vmatmul.mubr.bf16.gmra.mrb[0].mxu0 %v378
        %v573 = vpop.f32.mrb[0].mxu0
        %v574 = vadd.f32 %v288, %v573
        %v575 = vpop.f32.mrb[0].mxu0
        %v576 = vpop.f32.mrb[0].mxu0
        %v577 = vadd.f32 %v288, %v576
        %v578 = vpop.f32.mrb[0].mxu0
        %579 = vmatprep.mubr.bf16.mxu0 0
        %580 = vmatmul.mubr.bf16.gmra.mrb[0].mxu0 %v381
        %v581 = vpop.f32.mrb[0].mxu0
        %v582 = vadd.f32 %v288, %v581
        %v583 = vpop.f32.mrb[0].mxu0
        %v584 = vpop.f32.mrb[0].mxu0
        %v585 = vadd.f32 %v288, %v584
        %v586 = vpop.f32.mrb[0].mxu0
        %587 = vmatprep.mubr.bf16.mxu0 0
        %588 = vmatmul.mubr.bf16.gmra.mrb[0].mxu0 %v384
        %v589 = vpop.f32.mrb[0].mxu0
        %v590 = vadd.f32 %v288, %v589
        %v591 = vpop.f32.mrb[0].mxu0
        %v592 = vpop.f32.mrb[0].mxu0
        %v593 = vadd.f32 %v288, %v592
        %v594 = vpop.f32.mrb[0].mxu0
        %595 = vdwg.mxu0
        %v596 = vpack.c.bf16 %v425, %v421
        %v597 = vpack.c.bf16 %v435, %v431
        %v598 = vpack.c.bf16 %v445, %v441
        %v599 = vpack.c.bf16 %v455, %v451
        %v600 = vpack.c.bf16 %v465, %v461
        %v601 = vpack.c.bf16 %v475, %v471
        %v602 = vpack.c.bf16 %v485, %v481
        %v603 = vpack.c.bf16 %v495, %v491
        %v604 = vpack.c.bf16 %v427, %v423
        %v605 = vpack.c.bf16 %v437, %v433
        %v606 = vpack.c.bf16 %v447, %v443
        %v607 = vpack.c.bf16 %v457, %v453
        %v608 = vpack.c.bf16 %v467, %v463
        %v609 = vpack.c.bf16 %v477, %v473
        %v610 = vpack.c.bf16 %v487, %v483
        %v611 = vpack.c.bf16 %v497, %v493
        %v612 = vpack.c.bf16 %v537, %v534
        %v613 = vpack.c.bf16 %v545, %v542
        %v614 = vpack.c.bf16 %v553, %v550
        %v615 = vpack.c.bf16 %v561, %v558
        %v616 = vpack.c.bf16 %v569, %v566
        %v617 = vpack.c.bf16 %v577, %v574
        %v618 = vpack.c.bf16 %v585, %v582
        %v619 = vpack.c.bf16 %v593, %v590
        %v620 = vld [vmem:[%s3] sm:$0x1]
        %v622 = vlaneseq
        %v623 = vshrl.u32 %v622, 7
        %v624 = vsub.s32 0, %v623
        %v625 = vrot.slane %v620, %v624
        %627 = vmatprep.subr.bf16.mxu0 0
        %628 = vmatpush1.bf16.xpose.msra.mxu0 %v604
        %629 = vmatprep.subr.bf16.mxu0 0
        %630 = vmatpush1.bf16.xpose.msra.mxu0 %v605
        %631 = vmatprep.subr.bf16.mxu0 0
        %632 = vmatpush1.bf16.xpose.msra.mxu0 %v606
        %633 = vmatprep.subr.bf16.mxu0 0
        %634 = vmatpush1.bf16.xpose.msra.mxu0 %v607
        %635 = vmatprep.subr.bf16.mxu0 0
        %636 = vmatpush1.bf16.xpose.msra.mxu0 %v608
        %637 = vmatprep.subr.bf16.mxu0 0
        %638 = vmatpush1.bf16.xpose.msra.mxu0 %v609
        %639 = vmatprep.subr.bf16.mxu0 0
        %640 = vmatpush1.bf16.xpose.msra.mxu0 %v610
        %641 = vmatprep.subr.bf16.mxu0 0
        %642 = vmatpush1.bf16.xpose.msra.mxu0 %v611
        %643 = vmatprep.subr.bf16.mxu0 0
        %644 = vmatpush1.bf16.xpose.msra.mxu0 0
        %645 = vmatprep.subr.bf16.mxu0 0
        %646 = vmatpush1.bf16.xpose.msra.mxu0 0
        %647 = vmatprep.subr.bf16.mxu0 0
        %648 = vmatpush1.bf16.xpose.msra.mxu0 0
        %649 = vmatprep.subr.bf16.mxu0 0
        %650 = vmatpush1.bf16.xpose.msra.mxu0 0
        %651 = vmatprep.subr.bf16.mxu0 0
        %652 = vmatpush1.bf16.xpose.msra.mxu0 0
        %653 = vmatprep.subr.bf16.mxu0 0
        %654 = vmatpush1.bf16.xpose.msra.mxu0 0
        %655 = vmatprep.subr.bf16.mxu0 0
        %656 = vmatpush1.bf16.xpose.msra.mxu0 0
        %657 = vmatprep.subr.bf16.mxu0 0
        %658 = vmatpush1.bf16.xpose.msra.mxu0 0
        %659 = vmatprep.mubr.bf16.mxu0 0
        %660 = vmatmul.mubr.bf16.gmra.mrb[0].mxu0 %v596
        %v661 = vpop.f32.mrb[0].mxu0
        %v662 = vadd.f32 %v625, %v661
        %v663 = vpop.f32.mrb[0].mxu0
        %v664 = vpop.f32.mrb[0].mxu0
        %v665 = vadd.f32 %v625, %v664
        %v666 = vpop.f32.mrb[0].mxu0
        %667 = vmatprep.mubr.bf16.mxu0 0
        %668 = vmatmul.mubr.bf16.gmra.mrb[0].mxu0 %v597
        %v669 = vpop.f32.mrb[0].mxu0
        %v670 = vadd.f32 %v625, %v669
        %v671 = vpop.f32.mrb[0].mxu0
        %v672 = vpop.f32.mrb[0].mxu0
        %v673 = vadd.f32 %v625, %v672
        %v674 = vpop.f32.mrb[0].mxu0
        %675 = vmatprep.mubr.bf16.mxu0 0
        %676 = vmatmul.mubr.bf16.gmra.mrb[0].mxu0 %v598
        %v677 = vpop.f32.mrb[0].mxu0
        %v678 = vadd.f32 %v625, %v677
        %v679 = vpop.f32.mrb[0].mxu0
        %v680 = vpop.f32.mrb[0].mxu0
        %v681 = vadd.f32 %v625, %v680
        %v682 = vpop.f32.mrb[0].mxu0
        %683 = vmatprep.mubr.bf16.mxu0 0
        %684 = vmatmul.mubr.bf16.gmra.mrb[0].mxu0 %v599
        %v685 = vpop.f32.mrb[0].mxu0
        %v686 = vadd.f32 %v625, %v685
        %v687 = vpop.f32.mrb[0].mxu0
        %v688 = vpop.f32.mrb[0].mxu0
        %v689 = vadd.f32 %v625, %v688
        %v690 = vpop.f32.mrb[0].mxu0
        %691 = vmatprep.mubr.bf16.mxu0 0
        %692 = vmatmul.mubr.bf16.gmra.mrb[0].mxu0 %v600
        %v693 = vpop.f32.mrb[0].mxu0
        %v694 = vadd.f32 %v625, %v693
        %v695 = vpop.f32.mrb[0].mxu0
        %v696 = vpop.f32.mrb[0].mxu0
        %v697 = vadd.f32 %v625, %v696
        %v698 = vpop.f32.mrb[0].mxu0
        %699 = vmatprep.mubr.bf16.mxu0 0
        %700 = vmatmul.mubr.bf16.gmra.mrb[0].mxu0 %v601
        %v701 = vpop.f32.mrb[0].mxu0
        %v702 = vadd.f32 %v625, %v701
        %v703 = vpop.f32.mrb[0].mxu0
        %v704 = vpop.f32.mrb[0].mxu0
        %v705 = vadd.f32 %v625, %v704
        %v706 = vpop.f32.mrb[0].mxu0
        %707 = vmatprep.mubr.bf16.mxu0 0
        %708 = vmatmul.mubr.bf16.gmra.mrb[0].mxu0 %v602
        %v709 = vpop.f32.mrb[0].mxu0
        %v710 = vadd.f32 %v625, %v709
        %v711 = vpop.f32.mrb[0].mxu0
        %v712 = vpop.f32.mrb[0].mxu0
        %v713 = vadd.f32 %v625, %v712
        %v714 = vpop.f32.mrb[0].mxu0
        %715 = vmatprep.mubr.bf16.mxu0 0
        %716 = vmatmul.mubr.bf16.gmra.mrb[0].mxu0 %v603
        %v717 = vpop.f32.mrb[0].mxu0
        %v718 = vadd.f32 %v625, %v717
        %v719 = vpop.f32.mrb[0].mxu0
        %v720 = vpop.f32.mrb[0].mxu0
        %v721 = vadd.f32 %v625, %v720
        %v722 = vpop.f32.mrb[0].mxu0
        %723 = vdwg.mxu0
        %724 = vmax.xlane.f32.xlu0 %v662
        %v725 = vpop.xlane.xlu0 %724
        %726 = vmax.xlane.f32.xlu0 %v665
        %v727 = vpop.xlane.xlu0 %726
        %728 = vmax.xlane.f32.xlu0 %v670
        %v729 = vpop.xlane.xlu0 %728
        %730 = vmax.xlane.f32.xlu0 %v673
        %v731 = vpop.xlane.xlu0 %730
        %732 = vmax.xlane.f32.xlu0 %v678
        %v733 = vpop.xlane.xlu0 %732
        %734 = vmax.xlane.f32.xlu0 %v681
        %v735 = vpop.xlane.xlu0 %734
        %736 = vmax.xlane.f32.xlu0 %v686
        %v737 = vpop.xlane.xlu0 %736
        %738 = vmax.xlane.f32.xlu0 %v689
        %v739 = vpop.xlane.xlu0 %738
        %740 = vmax.xlane.f32.xlu0 %v694
        %v741 = vpop.xlane.xlu0 %740
        %742 = vmax.xlane.f32.xlu0 %v697
        %v743 = vpop.xlane.xlu0 %742
        %744 = vmax.xlane.f32.xlu0 %v702
        %v745 = vpop.xlane.xlu0 %744
        %746 = vmax.xlane.f32.xlu0 %v705
        %v747 = vpop.xlane.xlu0 %746
        %748 = vmax.xlane.f32.xlu0 %v710
        %v749 = vpop.xlane.xlu0 %748
        %750 = vmax.xlane.f32.xlu0 %v713
        %v751 = vpop.xlane.xlu0 %750
        %752 = vmax.xlane.f32.xlu0 %v718
        %v753 = vpop.xlane.xlu0 %752
        %754 = vmax.xlane.f32.xlu0 %v721
        %v755 = vpop.xlane.xlu0 %754
        %v756 = vsub.f32 %v662, %v725
        %v757 = vsub.f32 %v665, %v727
        %v758 = vsub.f32 %v670, %v729
        %v759 = vsub.f32 %v673, %v731
        %v760 = vsub.f32 %v678, %v733
        %v761 = vsub.f32 %v681, %v735
        %v762 = vsub.f32 %v686, %v737
        %v763 = vsub.f32 %v689, %v739
        %v764 = vsub.f32 %v694, %v741
        %v765 = vsub.f32 %v697, %v743
        %v766 = vsub.f32 %v702, %v745
        %v767 = vsub.f32 %v705, %v747
        %v768 = vsub.f32 %v710, %v749
        %v769 = vsub.f32 %v713, %v751
        %v770 = vsub.f32 %v718, %v753
        %v771 = vsub.f32 %v721, %v755
        %v772 = vmul.f32 %v756, 1.442695
        %v773 = vpow.pop %v772
        %v774 = vmul.f32 %v757, 1.442695
        %v775 = vpow.pop %v774
        %v776 = vmul.f32 %v758, 1.442695
        %v777 = vpow.pop %v776
        %v778 = vmul.f32 %v759, 1.442695
        %v779 = vpow.pop %v778
        %v780 = vmul.f32 %v760, 1.442695
        %v781 = vpow.pop %v780
        %v782 = vmul.f32 %v761, 1.442695
        %v783 = vpow.pop %v782
        %v784 = vmul.f32 %v762, 1.442695
        %v785 = vpow.pop %v784
        %v786 = vmul.f32 %v763, 1.442695
        %v787 = vpow.pop %v786
        %v788 = vmul.f32 %v764, 1.442695
        %v789 = vpow.pop %v788
        %v790 = vmul.f32 %v765, 1.442695
        %v791 = vpow.pop %v790
        %v792 = vmul.f32 %v766, 1.442695
        %v793 = vpow.pop %v792
        %v794 = vmul.f32 %v767, 1.442695
        %v795 = vpow.pop %v794
        %v796 = vmul.f32 %v768, 1.442695
        %v797 = vpow.pop %v796
        %v798 = vmul.f32 %v769, 1.442695
        %v799 = vpow.pop %v798
        %v800 = vmul.f32 %v770, 1.442695
        %v801 = vpow.pop %v800
        %v802 = vmul.f32 %v771, 1.442695
        %v803 = vpow.pop %v802
        %804 = vadd.xlane.f32.xlu0 %v773
        %v805 = vpop.xlane.xlu0 %804
        %806 = vadd.xlane.f32.xlu0 %v775
        %v807 = vpop.xlane.xlu0 %806
        %808 = vadd.xlane.f32.xlu0 %v777
        %v809 = vpop.xlane.xlu0 %808
        %810 = vadd.xlane.f32.xlu0 %v779
        %v811 = vpop.xlane.xlu0 %810
        %812 = vadd.xlane.f32.xlu0 %v781
        %v813 = vpop.xlane.xlu0 %812
        %814 = vadd.xlane.f32.xlu0 %v783
        %v815 = vpop.xlane.xlu0 %814
        %816 = vadd.xlane.f32.xlu0 %v785
        %v817 = vpop.xlane.xlu0 %816
        %818 = vadd.xlane.f32.xlu0 %v787
        %v819 = vpop.xlane.xlu0 %818
        %820 = vadd.xlane.f32.xlu0 %v789
        %v821 = vpop.xlane.xlu0 %820
        %822 = vadd.xlane.f32.xlu0 %v791
        %v823 = vpop.xlane.xlu0 %822
        %824 = vadd.xlane.f32.xlu0 %v793
        %v825 = vpop.xlane.xlu0 %824
        %826 = vadd.xlane.f32.xlu0 %v795
        %v827 = vpop.xlane.xlu0 %826
        %828 = vadd.xlane.f32.xlu0 %v797
        %v829 = vpop.xlane.xlu0 %828
        %830 = vadd.xlane.f32.xlu0 %v799
        %v831 = vpop.xlane.xlu0 %830
        %832 = vadd.xlane.f32.xlu0 %v801
        %v833 = vpop.xlane.xlu0 %832
        %834 = vadd.xlane.f32.xlu0 %v803
        %v835 = vpop.xlane.xlu0 %834
        %v836 = vrcp.pop %v805
        %v837 = vrcp.pop %v807
        %v838 = vrcp.pop %v809
        %v839 = vrcp.pop %v811
        %v840 = vrcp.pop %v813
        %v841 = vrcp.pop %v815
        %v842 = vrcp.pop %v817
        %v843 = vrcp.pop %v819
        %v844 = vrcp.pop %v821
        %v845 = vrcp.pop %v823
        %v846 = vrcp.pop %v825
        %v847 = vrcp.pop %v827
        %v848 = vrcp.pop %v829
        %v849 = vrcp.pop %v831
        %v850 = vrcp.pop %v833
        %v851 = vrcp.pop %v835
        %v852 = vmul.f32 %v773, %v836
        %v853 = vmul.f32 %v775, %v837
        %v854 = vmul.f32 %v777, %v838
        %v855 = vmul.f32 %v779, %v839
        %v856 = vmul.f32 %v781, %v840
        %v857 = vmul.f32 %v783, %v841
        %v858 = vmul.f32 %v785, %v842
        %v859 = vmul.f32 %v787, %v843
        %v860 = vmul.f32 %v789, %v844
        %v861 = vmul.f32 %v791, %v845
        %v862 = vmul.f32 %v793, %v846
        %v863 = vmul.f32 %v795, %v847
        %v864 = vmul.f32 %v797, %v848
        %v865 = vmul.f32 %v799, %v849
        %v866 = vmul.f32 %v801, %v850
        %v867 = vmul.f32 %v803, %v851
        %v868 = vpack.c.bf16 %v853, %v852
        %v869 = vpack.c.bf16 %v855, %v854
        %v870 = vpack.c.bf16 %v857, %v856
        %v871 = vpack.c.bf16 %v859, %v858
        %v872 = vpack.c.bf16 %v861, %v860
        %v873 = vpack.c.bf16 %v863, %v862
        %v874 = vpack.c.bf16 %v865, %v864
        %v875 = vpack.c.bf16 %v867, %v866
        %876 = vmatprep.subr.bf16.mxu0 0
        %877 = vmatpush1.bf16.msra.mxu0 %v612
        %878 = vmatprep.subr.bf16.mxu0 0
        %879 = vmatpush1.bf16.msra.mxu0 %v613
        %880 = vmatprep.subr.bf16.mxu0 0
        %881 = vmatpush1.bf16.msra.mxu0 %v614
        %882 = vmatprep.subr.bf16.mxu0 0
        %883 = vmatpush1.bf16.msra.mxu0 %v615
        %884 = vmatprep.subr.bf16.mxu0 0
        %885 = vmatpush1.bf16.msra.mxu0 %v616
        %886 = vmatprep.subr.bf16.mxu0 0
        %887 = vmatpush1.bf16.msra.mxu0 %v617
        %888 = vmatprep.subr.bf16.mxu0 0
        %889 = vmatpush1.bf16.msra.mxu0 %v618
        %890 = vmatprep.subr.bf16.mxu0 0
        %891 = vmatpush1.bf16.msra.mxu0 %v619
        %892 = vmatprep.subr.bf16.mxu0 0
        %893 = vmatpush1.bf16.msra.mxu0 0
        %894 = vmatprep.subr.bf16.mxu0 0
        %895 = vmatpush1.bf16.msra.mxu0 0
        %896 = vmatprep.subr.bf16.mxu0 0
        %897 = vmatpush1.bf16.msra.mxu0 0
        %898 = vmatprep.subr.bf16.mxu0 0
        %899 = vmatpush1.bf16.msra.mxu0 0
        %900 = vmatprep.subr.bf16.mxu0 0
        %901 = vmatpush1.bf16.msra.mxu0 0
        %902 = vmatprep.subr.bf16.mxu0 0
        %903 = vmatpush1.bf16.msra.mxu0 0
        %904 = vmatprep.subr.bf16.mxu0 0
        %905 = vmatpush1.bf16.msra.mxu0 0
        %906 = vmatprep.subr.bf16.mxu0 0
        %907 = vmatpush1.bf16.msra.mxu0 0
        %908 = vmatprep.mubr.bf16.mxu0 0
        %909 = vmatmul.mubr.bf16.gmra.mrb[0].mxu0 %v868
        %v910 = vpop.f32.mrb[0].mxu0
        %v911 = vadd.f32 0.0, %v910
        %v912 = vpop.f32.mrb[0].mxu0
        %v913 = vpop.f32.mrb[0].mxu0
        %v914 = vadd.f32 0.0, %v913
        %v915 = vpop.f32.mrb[0].mxu0
        %916 = vmatprep.mubr.bf16.mxu0 0
        %917 = vmatmul.mubr.bf16.gmra.mrb[0].mxu0 %v869
        %v918 = vpop.f32.mrb[0].mxu0
        %v919 = vadd.f32 0.0, %v918
        %v920 = vpop.f32.mrb[0].mxu0
        %v921 = vpop.f32.mrb[0].mxu0
        %v922 = vadd.f32 0.0, %v921
        %v923 = vpop.f32.mrb[0].mxu0
        %924 = vmatprep.mubr.bf16.mxu0 0
        %925 = vmatmul.mubr.bf16.gmra.mrb[0].mxu0 %v870
        %v926 = vpop.f32.mrb[0].mxu0
        %v927 = vadd.f32 0.0, %v926
        %v928 = vpop.f32.mrb[0].mxu0
        %v929 = vpop.f32.mrb[0].mxu0
        %v930 = vadd.f32 0.0, %v929
        %v931 = vpop.f32.mrb[0].mxu0
        %932 = vmatprep.mubr.bf16.mxu0 0
        %933 = vmatmul.mubr.bf16.gmra.mrb[0].mxu0 %v871
        %v934 = vpop.f32.mrb[0].mxu0
        %v935 = vadd.f32 0.0, %v934
        %v936 = vpop.f32.mrb[0].mxu0
        %v937 = vpop.f32.mrb[0].mxu0
        %v938 = vadd.f32 0.0, %v937
        %v939 = vpop.f32.mrb[0].mxu0
        %940 = vmatprep.mubr.bf16.mxu0 0
        %941 = vmatmul.mubr.bf16.gmra.mrb[0].mxu0 %v872
        %v942 = vpop.f32.mrb[0].mxu0
        %v943 = vadd.f32 0.0, %v942
        %v944 = vpop.f32.mrb[0].mxu0
        %v945 = vpop.f32.mrb[0].mxu0
        %v946 = vadd.f32 0.0, %v945
        %v947 = vpop.f32.mrb[0].mxu0
        %948 = vmatprep.mubr.bf16.mxu0 0
        %949 = vmatmul.mubr.bf16.gmra.mrb[0].mxu0 %v873
        %v950 = vpop.f32.mrb[0].mxu0
        %v951 = vadd.f32 0.0, %v950
        %v952 = vpop.f32.mrb[0].mxu0
        %v953 = vpop.f32.mrb[0].mxu0
        %v954 = vadd.f32 0.0, %v953
        %v955 = vpop.f32.mrb[0].mxu0
        %956 = vmatprep.mubr.bf16.mxu0 0
        %957 = vmatmul.mubr.bf16.gmra.mrb[0].mxu0 %v874
        %v958 = vpop.f32.mrb[0].mxu0
        %v959 = vadd.f32 0.0, %v958
        %v960 = vpop.f32.mrb[0].mxu0
        %v961 = vpop.f32.mrb[0].mxu0
        %v962 = vadd.f32 0.0, %v961
        %v963 = vpop.f32.mrb[0].mxu0
        %964 = vmatprep.mubr.bf16.mxu0 0
        %965 = vmatmul.mubr.bf16.gmra.mrb[0].mxu0 %v875
        %v966 = vpop.f32.mrb[0].mxu0
        %v967 = vadd.f32 0.0, %v966
        %v968 = vpop.f32.mrb[0].mxu0
        %v969 = vpop.f32.mrb[0].mxu0
        %v970 = vadd.f32 0.0, %v969
        %v971 = vpop.f32.mrb[0].mxu0
        %972 = vdwg.mxu0
        %v973 = vpack.c.bf16 %v914, %v911
        %v974 = vpack.c.bf16 %v922, %v919
        %v975 = vpack.c.bf16 %v930, %v927
        %v976 = vpack.c.bf16 %v938, %v935
        %v977 = vpack.c.bf16 %v946, %v943
        %v978 = vpack.c.bf16 %v954, %v951
        %v979 = vpack.c.bf16 %v962, %v959
        %v980 = vpack.c.bf16 %v970, %v967
        %v989 = vunpack.c.l.b16 %v973
        %v990 = vunpack.c.h.b16 %v973
        %v991 = vunpack.c.l.b16 %v974
        %v992 = vunpack.c.h.b16 %v974
        %v993 = vunpack.c.l.b16 %v975
        %v994 = vunpack.c.h.b16 %v975
        %v995 = vunpack.c.l.b16 %v976
        %v996 = vunpack.c.h.b16 %v976
        %v997 = vunpack.c.l.b16 %v977
        %v998 = vunpack.c.h.b16 %v977
        %v999 = vunpack.c.l.b16 %v978
        %v1000 = vunpack.c.h.b16 %v978
        %v1001 = vunpack.c.l.b16 %v979
        %v1002 = vunpack.c.h.b16 %v979
        %v1003 = vunpack.c.l.b16 %v980
        %v1004 = vunpack.c.h.b16 %v980
        %v1005 = vpack.c.b16 %v989, %v989
        %v1006 = vpack.c.b16 %v990, %v990
        %v1007 = vpack.c.b16 %v991, %v991
        %v1008 = vpack.c.b16 %v992, %v992
        %v1009 = vpack.c.b16 %v993, %v993
        %v1010 = vpack.c.b16 %v994, %v994
        %v1011 = vpack.c.b16 %v995, %v995
        %v1012 = vpack.c.b16 %v996, %v996
        %v1013 = vpack.c.b16 %v997, %v997
        %v1014 = vpack.c.b16 %v998, %v998
        %v1015 = vpack.c.b16 %v999, %v999
        %v1016 = vpack.c.b16 %v1000, %v1000
        %v1017 = vpack.c.b16 %v1001, %v1001
        %v1018 = vpack.c.b16 %v1002, %v1002
        %v1019 = vpack.c.b16 %v1003, %v1003
        %v1020 = vpack.c.b16 %v1004, %v1004
        %1037 = vst [vmem:[%s221] sm:$0xf] %v1005
        %1038 = vst [vmem:[%s221 + $0x4] sm:$0xf] %v1006
        %1039 = vst [vmem:[%s221 + $0x8] sm:$0xf] %v1007
        %1040 = vst [vmem:[%s221 + $0xc] sm:$0xf] %v1008
        %1041 = vst [vmem:[%s221 + $0x10] sm:$0xf] %v1009
        %1042 = vst [vmem:[%s221 + $0x14] sm:$0xf] %v1010
        %1043 = vst [vmem:[%s221 + $0x18] sm:$0xf] %v1011
        %1044 = vst [vmem:[%s221 + $0x1c] sm:$0xf] %v1012
        %1045 = vst [vmem:[%s221 + $0x20] sm:$0xf] %v1013
        %1046 = vst [vmem:[%s221 + $0x24] sm:$0xf] %v1014
        %1047 = vst [vmem:[%s221 + $0x28] sm:$0xf] %v1015
        %1048 = vst [vmem:[%s221 + $0x2c] sm:$0xf] %v1016
        %1049 = vst [vmem:[%s221 + $0x30] sm:$0xf] %v1017
        %1050 = vst [vmem:[%s221 + $0x34] sm:$0xf] %v1018
        %1051 = vst [vmem:[%s221 + $0x38] sm:$0xf] %v1019
        %1052 = vst [vmem:[%s221 + $0x3c] sm:$0xf] %v1020
        %v1061 = vunpack.c.l.b16 %v868
        %v1062 = vunpack.c.h.b16 %v868
        %v1063 = vunpack.c.l.b16 %v869
        %v1064 = vunpack.c.h.b16 %v869
        %v1065 = vunpack.c.l.b16 %v870
        %v1066 = vunpack.c.h.b16 %v870
        %v1067 = vunpack.c.l.b16 %v871
        %v1068 = vunpack.c.h.b16 %v871
        %v1069 = vunpack.c.l.b16 %v872
        %v1070 = vunpack.c.h.b16 %v872
        %v1071 = vunpack.c.l.b16 %v873
        %v1072 = vunpack.c.h.b16 %v873
        %v1073 = vunpack.c.l.b16 %v874
        %v1074 = vunpack.c.h.b16 %v874
        %v1075 = vunpack.c.l.b16 %v875
        %v1076 = vunpack.c.h.b16 %v875
        %v1077 = vpack.c.b16 %v1061, %v1061
        %v1078 = vpack.c.b16 %v1062, %v1062
        %v1079 = vpack.c.b16 %v1063, %v1063
        %v1080 = vpack.c.b16 %v1064, %v1064
        %v1081 = vpack.c.b16 %v1065, %v1065
        %v1082 = vpack.c.b16 %v1066, %v1066
        %v1083 = vpack.c.b16 %v1067, %v1067
        %v1084 = vpack.c.b16 %v1068, %v1068
        %v1085 = vpack.c.b16 %v1069, %v1069
        %v1086 = vpack.c.b16 %v1070, %v1070
        %v1087 = vpack.c.b16 %v1071, %v1071
        %v1088 = vpack.c.b16 %v1072, %v1072
        %v1089 = vpack.c.b16 %v1073, %v1073
        %v1090 = vpack.c.b16 %v1074, %v1074
        %v1091 = vpack.c.b16 %v1075, %v1075
        %v1092 = vpack.c.b16 %v1076, %v1076
        %1109 = vst [vmem:[%s228] sm:$0xf] %v1077
        %1110 = vst [vmem:[%s228 + $0x4] sm:$0xf] %v1078
        %1111 = vst [vmem:[%s228 + $0x8] sm:$0xf] %v1079
        %1112 = vst [vmem:[%s228 + $0xc] sm:$0xf] %v1080
        %1113 = vst [vmem:[%s228 + $0x10] sm:$0xf] %v1081
        %1114 = vst [vmem:[%s228 + $0x14] sm:$0xf] %v1082
        %1115 = vst [vmem:[%s228 + $0x18] sm:$0xf] %v1083
        %1116 = vst [vmem:[%s228 + $0x1c] sm:$0xf] %v1084
        %1117 = vst [vmem:[%s228 + $0x20] sm:$0xf] %v1085
        %1118 = vst [vmem:[%s228 + $0x24] sm:$0xf] %v1086
        %1119 = vst [vmem:[%s228 + $0x28] sm:$0xf] %v1087
        %1120 = vst [vmem:[%s228 + $0x2c] sm:$0xf] %v1088
        %1121 = vst [vmem:[%s228 + $0x30] sm:$0xf] %v1089
        %1122 = vst [vmem:[%s228 + $0x34] sm:$0xf] %v1090
        %1123 = vst [vmem:[%s228 + $0x38] sm:$0xf] %v1091
        %1124 = vst [vmem:[%s228 + $0x3c] sm:$0xf] %v1092
        %s1125 = sand.u32 %s120, 1
        %s1126 = scalar_lea.sflag [#allocation3], %s1125
        %s1127 = sand.u32 %s120, 1
        %s1128 = smul.addr %s1127, 64
        %s1129 = scalar_lea.vmem [#allocation2], %s1128
        %s1130 = sand.u32 %s146, 1
        %s1131 = scalar_lea.sflag [#allocation5], %s1130
        %s1132 = sand.u32 %s146, 1
        %s1133 = smul.addr %s1132, 64
        %s1134 = scalar_lea.vmem [#allocation4], %s1133
        // Predicated region
        $region37: #{tpu_custom_call.1} parent=35 // pred_check
          %p1135 = pneg %p130
        $region38: #{tpu_custom_call.1} parent=35 // pred_check_branch
          %1137 = sbr.rel (%p1135) target = $region40
        $region39: #{tpu_custom_call.1} parent=35 // pred_region
          %s1139 = ssub.s32 1024, 1024
          %1140 = vsyncadd %s1126, %s1139
          %s1141 = smul.addr %s23, 16
          %s1142 = smul.addr %s1141, 64
          %s1143 = scalar_lea.hbm %s4, %s1142
          %s1144 = sshll.u32 %s1129, 4
          %s1145 = int_to_ptr.vmem [resolvable:$true] %s1144
          %1150 = dma.vmem_to_hbm [thread:$0]  %s1145, 1024, %s1143, %s1126, 64, 64, 4
        $region40: #{tpu_custom_call.1} parent=35 // pred_fallthru
          _
        // Predicated region
        $region41: #{tpu_custom_call.1} parent=35 // pred_check
          %p1151 = pneg %p156
        $region42: #{tpu_custom_call.1} parent=35 // pred_check_branch
          %1153 = sbr.rel (%p1151) target = $region44
        $region43: #{tpu_custom_call.1} parent=35 // pred_region
          %s1155 = ssub.s32 1024, 1024
          %1156 = vsyncadd %s1131, %s1155
          %s1157 = smul.addr %s23, 16
          %s1158 = smul.addr %s1157, 64
          %s1159 = scalar_lea.hbm %s5, %s1158
          %s1160 = sshll.u32 %s1134, 4
          %s1161 = int_to_ptr.vmem [resolvable:$true] %s1160
          %1166 = dma.vmem_to_hbm [thread:$0]  %s1161, 1024, %s1159, %s1131, 64, 64, 4
        $region44: #{tpu_custom_call.1} parent=35 // pred_fallthru
          _
      $region36: #{tpu_custom_call.1} parent=5 // pred_fallthru
        _
      %p1167 = scmp.le.s32.totalorder 2, %s18
      // Predicated region
      $region45: #{tpu_custom_call.1} parent=5 // pred_check
        %p1168 = pneg %p1167
      $region46: #{tpu_custom_call.1} parent=5 // pred_check_branch
        %1170 = sbr.rel (%p1168) target = $region48
      $region47: #{tpu_custom_call.1} parent=5 // pred_region
        %s1171 = ssub.s32 %s18, 2
        // Predicated region
        $region49: #{tpu_custom_call.1} parent=47 // pred_check
          %p1172 = pneg %p136
        $region50: #{tpu_custom_call.1} parent=47 // pred_check_branch
          %1174 = sbr.rel (%p1172) target = $region52
        $region51: #{tpu_custom_call.1} parent=47 // pred_region
          %s1175 = sand.u32 %s121, 1
          %s1176 = scalar_lea.sflag [#allocation3], %s1175
          %s1177 = sand.u32 %s121, 1
          %s1178 = smul.addr %s1177, 64
          %s1179 = scalar_lea.vmem [#allocation2], %s1178
          %1180 = dma.done %s1176, 1024
        $region52: #{tpu_custom_call.1} parent=47 // pred_fallthru
          _
        // Predicated region
        $region53: #{tpu_custom_call.1} parent=47 // pred_check
          %p1181 = pneg %p162
        $region54: #{tpu_custom_call.1} parent=47 // pred_check_branch
          %1183 = sbr.rel (%p1181) target = $region56
        $region55: #{tpu_custom_call.1} parent=47 // pred_region
          %s1184 = sand.u32 %s147, 1
          %s1185 = scalar_lea.sflag [#allocation5], %s1184
          %s1186 = sand.u32 %s147, 1
          %s1187 = smul.addr %s1186, 64
          %s1188 = scalar_lea.vmem [#allocation4], %s1187
          %1189 = dma.done %s1185, 1024
        $region56: #{tpu_custom_call.1} parent=47 // pred_fallthru
          _
      $region48: #{tpu_custom_call.1} parent=5 // pred_fallthru
        _
    $region6: #{tpu_custom_call.1} parent=1 // loop_footer
      %s22 = sadd.s32 1, %s18
    $region7: #{tpu_custom_call.1} parent=1 // loop_footer_branch
      %17 = sbr.rel target = $region3
    $region8: #{tpu_custom_call.1} parent=1 // loop_exit
      _
    %1190 = vsyncpa [#allocation3], 1
    %s1191 = scalar_lea.sflag [#allocation3], 1
    %1192 = vsyncpa %s1191, 1
    %1193 = vsyncpa [#allocation5], 1
    %s1194 = scalar_lea.sflag [#allocation5], 1
    %1195 = vsyncpa %s1194, 1

</llo_original>
